<compile_context>
chip_gen: v5e
topology: v5e:2x2
jax: 0.10.0
libtpu: 0.0.40
codegen_flags: <defaults>
</compile_context>

<pallas_src>
import math

import jax
import jax.numpy as jnp
from jax import lax
from jax.experimental import pallas as pl
from jax.experimental.pallas import tpu as pltpu


def _round_up(x, m):
    return ((x + m - 1) // m) * m


def _ff_geglu_kernel(x_ref, w1_ref, b1_ref, w2_ref, b2_ref, o_ref, acc_ref):
    """One (row-tile i, inner-tile k) step of the fused GEGLU feed-forward.

    x_ref:   (tm, dim)          input rows (native dtype, fed to MXU directly)
    w1_ref:  (dim, 2*tn)        fused [hidden | gate] slice of GEGLU proj weight
    b1_ref:  (1, 2*tn)          fused [hidden | gate] slice of GEGLU proj bias
    w2_ref:  (tn, dim_out)      matching slice of the output projection weight
    b2_ref:  (1, dim_out)       output bias (folded into acc init at k == 0)
    o_ref:   (tm, dim_out)      output tile (written on the last k step)
    acc_ref: (tm, dim_out) f32  accumulator scratch, resident across k
    """
    k = pl.program_id(1)
    tn = w2_ref.shape[0]

    @pl.when(k == 0)
    def _init():
        # Fold the output bias into the accumulator init -> added exactly once.
        acc_ref[...] = jnp.broadcast_to(
            b2_ref[...].astype(jnp.float32), acc_ref.shape)

    # Single fused MXU pass produces both the hidden and gate slices (f32 acc).
    h = jnp.dot(x_ref[...], w1_ref[...], preferred_element_type=jnp.float32)
    h = h + b1_ref[...].astype(jnp.float32)
    hidden = h[:, :tn]
    gate = h[:, tn:]

    # Exact (erf) GELU, matching torch.nn.functional.gelu default.
    gelu_gate = 0.5 * gate * (1.0 + lax.erf(gate * (1.0 / math.sqrt(2.0))))

    # Dropout(p=0.0) is identity. Cast back to the weight dtype so the second
    # matmul also runs at the MXU's native (e.g. bf16) rate.
    y = (hidden * gelu_gate).astype(w2_ref.dtype)

    acc_ref[...] += jnp.dot(y, w2_ref[...], preferred_element_type=jnp.float32)

    @pl.when(k == pl.num_programs(1) - 1)
    def _store():
        o_ref[...] = acc_ref[...].astype(o_ref.dtype)


def feedforward_geglu(x, params, *, tm=None, tn=None):
    """x: (B, S, dim) -> (B, S, dim_out). Fused GEGLU feed-forward."""
    B, S, dim = x.shape
    wh, bh, wg, bg, w2, b2 = params
    inner = wh.shape[1]
    dim_out = w2.shape[1]

    M = B * S
    x2d = x.reshape(M, dim)

    # ---- inner-dimension tile (reduction axis of the second matmul) ----
    if tn is None:
        for cand in (512, 256, 128):
            if inner % cand == 0:
                tn = cand
                break
        else:
            tn = inner  # tiny inner dim: single tile
    assert inner % tn == 0, "inner dim must be divisible by the inner tile"
    n_k = inner // tn

    # ---- row tile (amortizes per-grid-step overhead); pad ragged M ----
    if tm is None:
        tm = 256
    if M <= tm:
        tm = _round_up(M, 8)
    M_pad = _round_up(M, tm)
    if M_pad != M:
        x2d = jnp.pad(x2d, ((0, M_pad - M), (0, 0)))

    # ---- re-pack W1/b1 so each inner tile's [hidden | gate] cols are fused ----
    wh3 = wh.reshape(dim, n_k, tn)
    wg3 = wg.reshape(dim, n_k, tn)
    w1f = jnp.concatenate([wh3, wg3], axis=-1).reshape(dim, n_k * 2 * tn)
    b1f = jnp.concatenate(
        [bh.reshape(n_k, tn), bg.reshape(n_k, tn)], axis=-1
    ).reshape(1, n_k * 2 * tn)
    b22 = b2.reshape(1, dim_out)

    # ---- VMEM budget for the compiler (tiles + double buffers + headroom) ----
    x_bytes = jnp.dtype(x.dtype).itemsize
    w_bytes = jnp.dtype(wh.dtype).itemsize
    est = (2 * tm * dim * x_bytes            # x tiles (double buffered)
           + 2 * dim * 2 * tn * w_bytes      # fused W1 tiles
           + 2 * 2 * tn * w_bytes            # fused b1 tiles
           + 2 * tn * dim_out * w_bytes      # W2 tiles
           + 2 * dim_out * w_bytes           # b2
           + 2 * tm * dim_out * x_bytes      # output tiles
           + tm * dim_out * 4)               # f32 accumulator
    vmem_limit = max(32 << 20, min(int(est * 2) + (4 << 20), 96 << 20))

    out2d = pl.pallas_call(
        _ff_geglu_kernel,
        out_shape=jax.ShapeDtypeStruct((M_pad, dim_out), x.dtype),
        grid_spec=pltpu.PrefetchScalarGridSpec(
            num_scalar_prefetch=0,
            grid=(M_pad // tm, n_k),
            in_specs=[
                pl.BlockSpec((tm, dim), lambda i, k: (i, 0)),        # x rows
                pl.BlockSpec((dim, 2 * tn), lambda i, k: (0, k)),    # fused W1 slice
                pl.BlockSpec((1, 2 * tn), lambda i, k: (0, k)),      # fused b1 slice
                pl.BlockSpec((tn, dim_out), lambda i, k: (k, 0)),    # W2 slice
                pl.BlockSpec((1, dim_out), lambda i, k: (0, 0)),     # b2
            ],
            out_specs=pl.BlockSpec((tm, dim_out), lambda i, k: (i, 0)),
            scratch_shapes=[pltpu.VMEM((tm, dim_out), jnp.float32)],
        ),
        compiler_params=pltpu.CompilerParams(
            dimension_semantics=("parallel", "arbitrary"),
            vmem_limit_bytes=vmem_limit,
        ),
    )(x2d, w1f, b1f, w2, b22)

    if M_pad != M:
        out2d = out2d[:M]
    return out2d.reshape(B, S, dim_out)


def init_feedforward_params(key, dim, dim_out=None, mult=4, dtype=jnp.float32):
    """Synthetic init matching the PyTorch module's parameter shapes.

    GEGLU.proj is Linear(dim, 2*inner); its weight is stored pre-split into the
    "hidden" half and "gate" half (same split as .chunk(2, dim=-1) on the
    activations). Use dtype=jnp.bfloat16 for MXU-native weights in production.
    """
    inner = int(dim * mult)
    dim_out = dim_out if dim_out is not None else dim
    k1, k2, k3, k4, k5, k6 = jax.random.split(key, 6)

    bound1 = 1.0 / math.sqrt(dim)
    wh = jax.random.uniform(k1, (dim, inner), dtype, -bound1, bound1)
    bh = jax.random.uniform(k2, (inner,), dtype, -bound1, bound1)
    wg = jax.random.uniform(k3, (dim, inner), dtype, -bound1, bound1)
    bg = jax.random.uniform(k4, (inner,), dtype, -bound1, bound1)

    bound2 = 1.0 / math.sqrt(inner)
    w2 = jax.random.uniform(k5, (inner, dim_out), dtype, -bound2, bound2)
    b2 = jax.random.uniform(k6, (dim_out,), dtype, -bound2, bound2)
    return (wh, bh, wg, bg, w2, b2)


def _reference_feedforward(x, params):
    """Pure-JAX reference (same math) for correctness checking."""
    wh, bh, wg, bg, w2, b2 = params
    hidden = x @ wh + bh
    gate = x @ wg + bg
    gelu_gate = 0.5 * gate * (1.0 + lax.erf(gate / math.sqrt(2.0)))
    y = hidden * gelu_gate
    return y @ w2 + b2


if __name__ == "__main__":
    key = jax.random.PRNGKey(0)
    k_x, k_p = jax.random.split(key)

    B, S, dim = 2, 8, 32          # small shapes: batch=2, seq=8, channels=32
    mult = 8                      # inner = 256 -> two inner tiles when tn=128
    x = jax.random.normal(k_x, (B, S, dim), dtype=jnp.float32)
    params = init_feedforward_params(k_p, dim, mult=mult)

    ref = _reference_feedforward(x, params)

    # Multi-step accumulation path (inner split into 2 tiles of 128).
    out = jax.block_until_ready(feedforward_geglu(x, params, tn=128))
    assert out.shape == (B, S, dim), out.shape
    assert jnp.allclose(out, ref, atol=1e-4, rtol=1e-4), "mismatch vs reference (tn=128)"

    # Default tiling path (single inner tile).
    out2 = jax.block_until_ready(feedforward_geglu(x, params))
    assert jnp.allclose(out2, ref, atol=1e-4, rtol=1e-4), "mismatch vs reference (default)"

    print("KERNEL_OK")
</pallas_src>

<mosaic_0001>
module attributes {stable_mosaic.version = 11 : i64} {
  func.func @_ff_geglu_kernel(%arg0: i32, %arg1: i32, %arg2: memref<16x32xf32, #tpu.memory_space<vmem>>, %arg3: memref<32x256xf32, #tpu.memory_space<vmem>>, %arg4: memref<1x256xf32, #tpu.memory_space<vmem>>, %arg5: memref<128x32xf32, #tpu.memory_space<vmem>>, %arg6: memref<1x32xf32, #tpu.memory_space<vmem>>, %arg7: memref<16x32xf32, #tpu.memory_space<vmem>>, %arg8: memref<16x32xf32, #tpu.memory_space<vmem>>) attributes {dimension_semantics = [#tpu.dimension_semantics<parallel>, #tpu.dimension_semantics<arbitrary>], iteration_bounds = array<i64: 1, 2>, scalar_prefetch = 0 : i64, scratch_operands = 1 : i64, tpu.core_type = #tpu.core_type<tc>, window_params = [{transform_indices = @transform_0, window_bounds = array<i64: 16, 32>}, {transform_indices = @transform_1, window_bounds = array<i64: 32, 256>}, {transform_indices = @transform_2, window_bounds = array<i64: 1, 256>}, {transform_indices = @transform_3, window_bounds = array<i64: 128, 32>}, {pipeline_mode = #tpu.pipeline_mode<synchronous>, transform_indices = @transform_4, window_bounds = array<i64: 1, 32>}, {transform_indices = @transform_5, window_bounds = array<i64: 16, 32>}]} {
    %c0_i32 = arith.constant 0 : i32
    %0 = arith.cmpi eq, %arg1, %c0_i32 : i32
    %1 = arith.extui %0 : i1 to i32
    %c0_i32_0 = arith.constant 0 : i32
    %2 = arith.cmpi ne, %1, %c0_i32_0 : i32
    scf.if %2 {
      %c0_17 = arith.constant 0 : index
      %c0_18 = arith.constant 0 : index
      %28 = vector.load %arg6[%c0_17, %c0_18] : memref<1x32xf32, #tpu.memory_space<vmem>>, vector<1x32xf32>
      %29 = vector.shape_cast %28 : vector<1x32xf32> to vector<1x32xf32>
      %30 = vector.broadcast %29 : vector<1x32xf32> to vector<16x32xf32>
      %c0_19 = arith.constant 0 : index
      %c0_20 = arith.constant 0 : index
      %31 = vector.load %arg8[%c0_19, %c0_20] : memref<16x32xf32, #tpu.memory_space<vmem>>, vector<16x32xf32>
      tpu.vector_store %arg8[%c0_19, %c0_20], %30 {strides = array<i32>} : memref<16x32xf32, #tpu.memory_space<vmem>>, vector<16x32xf32>,
    } else {
    }
    %c0 = arith.constant 0 : index
    %c0_1 = arith.constant 0 : index
    %3 = vector.load %arg2[%c0, %c0_1] : memref<16x32xf32, #tpu.memory_space<vmem>>, vector<16x32xf32>
    %c0_2 = arith.constant 0 : index
    %c0_3 = arith.constant 0 : index
    %4 = vector.load %arg3[%c0_2, %c0_3] : memref<32x256xf32, #tpu.memory_space<vmem>>, vector<32x256xf32>
    %cst = arith.constant dense<0.000000e+00> : vector<16x256xf32>
    %5 = tpu.matmul %3, %4, %cst {dimension_numbers = #tpu.dot_dimension_numbers<[1], [0], [0], [1], [0, 0, 1, 1], [], []>} : vector<16x32xf32>, vector<32x256xf32>, vector<16x256xf32> -> vector<16x256xf32>
    %c0_4 = arith.constant 0 : index
    %c0_5 = arith.constant 0 : index
    %6 = vector.load %arg4[%c0_4, %c0_5] : memref<1x256xf32, #tpu.memory_space<vmem>>, vector<1x256xf32>
    %7 = vector.broadcast %6 : vector<1x256xf32> to vector<16x256xf32>
    %8 = arith.addf %5, %7 : vector<16x256xf32>
    %9 = vector.extract_strided_slice %8 {offsets = [0, 0], sizes = [16, 128], strides = [1, 1]} : vector<16x256xf32> to vector<16x128xf32>
    %10 = vector.extract_strided_slice %8 {offsets = [0, 128], sizes = [16, 128], strides = [1, 1]} : vector<16x256xf32> to vector<16x128xf32>
    %cst_6 = arith.constant 5.000000e-01 : f32
    %11 = vector.broadcast %cst_6 : f32 to vector<16x128xf32>
    %12 = arith.mulf %11, %10 : vector<16x128xf32>
    %cst_7 = arith.constant 0.707106769 : f32
    %13 = vector.broadcast %cst_7 : f32 to vector<16x128xf32>
    %14 = arith.mulf %10, %13 : vector<16x128xf32>
    %15 = math.erf %14 : vector<16x128xf32>
    %cst_8 = arith.constant 1.000000e+00 : f32
    %16 = vector.broadcast %cst_8 : f32 to vector<16x128xf32>
    %17 = arith.addf %16, %15 : vector<16x128xf32>
    %18 = arith.mulf %12, %17 : vector<16x128xf32>
    %19 = arith.mulf %9, %18 : vector<16x128xf32>
    %c0_9 = arith.constant 0 : index
    %c0_10 = arith.constant 0 : index
    %20 = vector.load %arg8[%c0_9, %c0_10] : memref<16x32xf32, #tpu.memory_space<vmem>>, vector<16x32xf32>
    %c0_11 = arith.constant 0 : index
    %c0_12 = arith.constant 0 : index
    %21 = vector.load %arg5[%c0_11, %c0_12] : memref<128x32xf32, #tpu.memory_space<vmem>>, vector<128x32xf32>
    %cst_13 = arith.constant dense<0.000000e+00> : vector<16x32xf32>
    %22 = tpu.matmul %19, %21, %cst_13 {dimension_numbers = #tpu.dot_dimension_numbers<[1], [0], [0], [1], [0, 0, 1, 1], [], []>} : vector<16x128xf32>, vector<128x32xf32>, vector<16x32xf32> -> vector<16x32xf32>
    %23 = arith.addf %20, %22 : vector<16x32xf32>
    %c0_14 = arith.constant 0 : index
    %c0_15 = arith.constant 0 : index
    %24 = vector.load %arg8[%c0_14, %c0_15] : memref<16x32xf32, #tpu.memory_space<vmem>>, vector<16x32xf32>
    tpu.vector_store %arg8[%c0_14, %c0_15], %23 {strides = array<i32>} : memref<16x32xf32, #tpu.memory_space<vmem>>, vector<16x32xf32>,
    %c1_i32 = arith.constant 1 : i32
    %25 = arith.cmpi eq, %arg1, %c1_i32 : i32
    %26 = arith.extui %25 : i1 to i32
    %c0_i32_16 = arith.constant 0 : i32
    %27 = arith.cmpi ne, %26, %c0_i32_16 : i32
    scf.if %27 {
      %c0_17 = arith.constant 0 : index
      %c0_18 = arith.constant 0 : index
      %28 = vector.load %arg8[%c0_17, %c0_18] : memref<16x32xf32, #tpu.memory_space<vmem>>, vector<16x32xf32>
      %c0_19 = arith.constant 0 : index
      %c0_20 = arith.constant 0 : index
      %29 = vector.load %arg7[%c0_19, %c0_20] : memref<16x32xf32, #tpu.memory_space<vmem>>, vector<16x32xf32>
      tpu.vector_store %arg7[%c0_19, %c0_20], %28 {strides = array<i32>} : memref<16x32xf32, #tpu.memory_space<vmem>>, vector<16x32xf32>,
    } else {
    }
    return
  }
  func.func @transform_0(%arg0: i32, %arg1: i32) -> (i32, i32) {
    %c0_i32 = arith.constant 0 : i32
    %c0_i32_0 = arith.constant 0 : i32
    return %arg0, %c0_i32 : i32, i32
  }
  func.func @transform_1(%arg0: i32, %arg1: i32) -> (i32, i32) {
    %c0_i32 = arith.constant 0 : i32
    %c0_i32_0 = arith.constant 0 : i32
    return %c0_i32, %arg1 : i32, i32
  }
  func.func @transform_2(%arg0: i32, %arg1: i32) -> (i32, i32) {
    %c0_i32 = arith.constant 0 : i32
    %c0_i32_0 = arith.constant 0 : i32
    return %c0_i32, %arg1 : i32, i32
  }
  func.func @transform_3(%arg0: i32, %arg1: i32) -> (i32, i32) {
    %c0_i32 = arith.constant 0 : i32
    %c0_i32_0 = arith.constant 0 : i32
    return %arg1, %c0_i32 : i32, i32
  }
  func.func @transform_4(%arg0: i32, %arg1: i32) -> (i32, i32) {
    %c0_i32 = arith.constant 0 : i32
    %c0_i32_0 = arith.constant 0 : i32
    %c0_i32_1 = arith.constant 0 : i32
    return %c0_i32, %c0_i32_0 : i32, i32
  }
  func.func @transform_5(%arg0: i32, %arg1: i32) -> (i32, i32) {
    %c0_i32 = arith.constant 0 : i32
    %c0_i32_0 = arith.constant 0 : i32
    return %arg0, %c0_i32 : i32, i32
  }
}

</mosaic_0001>

<llo_original>
// kernel: tpu_custom_call.1
$region0: #{tpu_custom_call.1}
  #allocation0 [shape = 'u32[]', space=smem, size = 0x4, offset = 0x4, fixed_abs, tag = 'smem constant byte address 0x4 - core index']
  #allocation1 [shape = 'u32[72,128]{1,0:T(1,128)}', space=vmem, size = 0x9000, scoped, tag = 'internal scratch']
  #allocation2 [shape = 'f32[16,32]{1,0:T(8,128)}', space=vmem, size = 0x2000, scoped, tag = 'scratch operand']
  %s0 = inlined_call_operand.vmem [shape: f32[16,32], index: 0, kind: input, shape index: {}]
  %s1 = inlined_call_operand.vmem [shape: f32[32,512], index: 1, kind: input, shape index: {}]
  %s2 = inlined_call_operand.vmem [shape: f32[1,512], index: 2, kind: input, shape index: {}]
  %s3 = inlined_call_operand.vmem [shape: f32[256,32], index: 3, kind: input, shape index: {}]
  %s4 = inlined_call_operand.vmem [shape: f32[1,32], index: 4, kind: input, shape index: {}]
  %s5 = inlined_call_operand.hbm [shape: f32[16,32], index: 5, kind: output, shape index: {}]
  %s6 = sld [smem:[#allocation0]]
  $region84: #{tpu_custom_call.1} parent=0
    _
  %s8 = ssub.s32 1, %s6
  %s9 = scalar_select 0, %s8, %s6
  $region1: #{tpu_custom_call.1} parent=0
    #allocation3 [shape = 'u8[65536]{0}', space=vmem, size = 0x10000, scoped, tag = 'input window, operand 1']
    #allocation4 [shape = 'u8[8192]{0}', space=vmem, size = 0x2000, scoped, tag = 'output window, operand 0, single buffered']
    #allocation5 [shape = 's32[2]{0}', space=sflag, size = 0x8, scoped, tag = 'scoped memory for tpu_custom_call.1']
    %10 = vsyncpa [#allocation5], 0
    loop: start=0, step=1, limit=4
    $region2: #{tpu_custom_call.1} parent=1 // loop_pre_header
      _
    $region3: #{tpu_custom_call.1} parent=1 // loop_header
      %s12 = sphi 0, %s16
      %p13 = scmp.ge.s32.totalorder %s12, 4
      %s19 = sphi 0, %s31
      %s20 = sphi 0, %s27
      %s21 = sphi 0, %s19
      %s22 = sphi 0, %s20
      %s23 = sphi 0, %s21
      %s24 = sphi 0, %s22
      %s34 = sphi 0, %s36
      %s37 = sphi 0, %s34
      %s38 = sphi 0, %s37
      %s54 = sphi 0, %s38
      %s60 = sphi 0, %s62
      %s63 = sphi 0, %s60
      %s64 = sphi 0, %s63
      %s80 = sphi 0, %s64
      %s86 = sphi 0, %s88
      %s89 = sphi 0, %s86
      %s90 = sphi 0, %s89
      %s106 = sphi 0, %s90
      %s112 = sphi 0, %s114
      %s115 = sphi 0, %s112
      %s116 = sphi 0, %s115
      %s132 = sphi 0, %s116
      %s136 = sphi 0, %s136
      %s138 = sphi 0, %s136
      %s139 = sphi 0, %s138
      %s153 = sphi 0, %s139
      %s159 = sphi 0, %s161
      %s162 = sphi 0, %s159
      %s163 = sphi 0, %s162
      %s179 = sphi 0, %s163
    $region4: #{tpu_custom_call.1} parent=1 // loop_header_branch
      %15 = sbr.rel (%p13) target = $region8
    $region5: #{tpu_custom_call.1} parent=1 // loop_body
      %s17 = ssub.s32 %s12, 1
      %s18 = ssub.s32 %s12, 2
      %s25 = sadd.s32 1, %s20
      %p26 = scmp.ge.s32.totalorder %s25, 2
      %s27 = scalar_select %p26, 0, %s25
      %s28 = sadd.s32 1, %s19
      %s29 = scalar_select %p26, %s28, %s19
      %p30 = scmp.ge.s32.totalorder %s29, 1
      %s31 = scalar_select %p30, 0, %s29
      %s32 = ssub.s32 %s19, %s31
      %p33 = scmp.eq.s32.totalorder %s32, 0
      %s35 = sadd.s32 %s34, 1
      %s36 = scalar_select %p33, %s34, %s35
      %p39 = pneg %p33
      %p40 = scmp.eq.s32.totalorder %s12, 1
      %p41 = por %p39, %p40
      %p42 = scmp.ne.s32.totalorder %s34, %s37
      %p43 = scmp.eq.s32.totalorder %s12, 0
      %p44 = por %p42, %p43
      %p45 = scmp.ne.s32.totalorder %s34, %s37
      %p46 = scmp.eq.s32.totalorder %s17, 1
      %p47 = por %p45, %p46
      %p48 = scmp.ne.s32.totalorder %s37, %s38
      %p49 = scmp.eq.s32.totalorder %s17, 0
      %p50 = por %p48, %p49
      %p51 = scmp.ne.s32.totalorder %s37, %s38
      %p52 = scmp.eq.s32.totalorder %s18, 1
      %p53 = por %p51, %p52
      %p55 = scmp.ne.s32.totalorder %s38, %s54
      %p56 = scmp.eq.s32.totalorder %s18, 0
      %p57 = por %p55, %p56
      %s58 = ssub.s32 %s20, %s27
      %p59 = scmp.eq.s32.totalorder %s58, 0
      %s61 = sadd.s32 %s60, 1
      %s62 = scalar_select %p59, %s60, %s61
      %p65 = pneg %p59
      %p66 = scmp.eq.s32.totalorder %s12, 1
      %p67 = por %p65, %p66
      %p68 = scmp.ne.s32.totalorder %s60, %s63
      %p69 = scmp.eq.s32.totalorder %s12, 0
      %p70 = por %p68, %p69
      %p71 = scmp.ne.s32.totalorder %s60, %s63
      %p72 = scmp.eq.s32.totalorder %s17, 1
      %p73 = por %p71, %p72
      %p74 = scmp.ne.s32.totalorder %s63, %s64
      %p75 = scmp.eq.s32.totalorder %s17, 0
      %p76 = por %p74, %p75
      %p77 = scmp.ne.s32.totalorder %s63, %s64
      %p78 = scmp.eq.s32.totalorder %s18, 1
      %p79 = por %p77, %p78
      %p81 = scmp.ne.s32.totalorder %s64, %s80
      %p82 = scmp.eq.s32.totalorder %s18, 0
      %p83 = por %p81, %p82
      %s84 = ssub.s32 %s20, %s27
      %p85 = scmp.eq.s32.totalorder %s84, 0
      %s87 = sadd.s32 %s86, 1
      %s88 = scalar_select %p85, %s86, %s87
      %p91 = pneg %p85
      %p92 = scmp.eq.s32.totalorder %s12, 1
      %p93 = por %p91, %p92
      %p94 = scmp.ne.s32.totalorder %s86, %s89
      %p95 = scmp.eq.s32.totalorder %s12, 0
      %p96 = por %p94, %p95
      %p97 = scmp.ne.s32.totalorder %s86, %s89
      %p98 = scmp.eq.s32.totalorder %s17, 1
      %p99 = por %p97, %p98
      %p100 = scmp.ne.s32.totalorder %s89, %s90
      %p101 = scmp.eq.s32.totalorder %s17, 0
      %p102 = por %p100, %p101
      %p103 = scmp.ne.s32.totalorder %s89, %s90
      %p104 = scmp.eq.s32.totalorder %s18, 1
      %p105 = por %p103, %p104
      %p107 = scmp.ne.s32.totalorder %s90, %s106
      %p108 = scmp.eq.s32.totalorder %s18, 0
      %p109 = por %p107, %p108
      %s110 = ssub.s32 %s20, %s27
      %p111 = scmp.eq.s32.totalorder %s110, 0
      %s113 = sadd.s32 %s112, 1
      %s114 = scalar_select %p111, %s112, %s113
      %p117 = pneg %p111
      %p118 = scmp.eq.s32.totalorder %s12, 1
      %p119 = por %p117, %p118
      %p120 = scmp.ne.s32.totalorder %s112, %s115
      %p121 = scmp.eq.s32.totalorder %s12, 0
      %p122 = por %p120, %p121
      %p123 = scmp.ne.s32.totalorder %s112, %s115
      %p124 = scmp.eq.s32.totalorder %s17, 1
      %p125 = por %p123, %p124
      %p126 = scmp.ne.s32.totalorder %s115, %s116
      %p127 = scmp.eq.s32.totalorder %s17, 0
      %p128 = por %p126, %p127
      %p129 = scmp.ne.s32.totalorder %s115, %s116
      %p130 = scmp.eq.s32.totalorder %s18, 1
      %p131 = por %p129, %p130
      %p133 = scmp.ne.s32.totalorder %s116, %s132
      %p134 = scmp.eq.s32.totalorder %s18, 0
      %p135 = por %p133, %p134
      %s137 = sadd.s32 %s136, 1
      %p140 = scmp.eq.s32.totalorder %s12, 1
      %p141 = scmp.ne.s32.totalorder %s136, %s138
      %p142 = scmp.eq.s32.totalorder %s12, 0
      %p143 = por %p141, %p142
      %p144 = scmp.ne.s32.totalorder %s136, %s138
      %p145 = scmp.eq.s32.totalorder %s17, 1
      %p146 = por %p144, %p145
      %p147 = scmp.ne.s32.totalorder %s138, %s139
      %p148 = scmp.eq.s32.totalorder %s17, 0
      %p149 = por %p147, %p148
      %p150 = scmp.ne.s32.totalorder %s138, %s139
      %p151 = scmp.eq.s32.totalorder %s18, 1
      %p152 = por %p150, %p151
      %p154 = scmp.ne.s32.totalorder %s139, %s153
      %p155 = scmp.eq.s32.totalorder %s18, 0
      %p156 = por %p154, %p155
      %s157 = ssub.s32 %s19, %s31
      %p158 = scmp.eq.s32.totalorder %s157, 0
      %s160 = sadd.s32 %s159, 1
      %s161 = scalar_select %p158, %s159, %s160
      %p164 = pneg %p158
      %p165 = scmp.eq.s32.totalorder %s12, 1
      %p166 = por %p164, %p165
      %p167 = scmp.ne.s32.totalorder %s159, %s162
      %p168 = scmp.eq.s32.totalorder %s12, 0
      %p169 = por %p167, %p168
      %p170 = scmp.ne.s32.totalorder %s159, %s162
      %p171 = scmp.eq.s32.totalorder %s17, 1
      %p172 = por %p170, %p171
      %p173 = scmp.ne.s32.totalorder %s162, %s163
      %p174 = scmp.eq.s32.totalorder %s17, 0
      %p175 = por %p173, %p174
      %p176 = scmp.ne.s32.totalorder %s162, %s163
      %p177 = scmp.eq.s32.totalorder %s18, 1
      %p178 = por %p176, %p177
      %p180 = scmp.ne.s32.totalorder %s163, %s179
      %p181 = scmp.eq.s32.totalorder %s18, 0
      %p182 = por %p180, %p181
      %p183 = scmp.le.s32.totalorder 1, %s12
      %p184 = scmp.lt.s32.totalorder %s12, 3
      %p185 = pnand %p183, %p184
      %p186 = pneg %p185
      // Predicated region
      $region9: #{tpu_custom_call.1} parent=5 // pred_check
        _
      $region10: #{tpu_custom_call.1} parent=5 // pred_check_branch
        %188 = sbr.rel (%p185) target = $region12
      $region11: #{tpu_custom_call.1} parent=5 // pred_region
        %s189 = ssub.s32 %s12, 1
        // Predicated region
        $region13: #{tpu_custom_call.1} parent=11 // pred_check
          %p190 = pneg %p50
        $region14: #{tpu_custom_call.1} parent=11 // pred_check_branch
          %192 = sbr.rel (%p190) target = $region16
        $region15: #{tpu_custom_call.1} parent=11 // pred_region
          %s193 = smul.u32 2, %s21
          %p194 = scmp.lt.s32.totalorder %s193, 1
          %s195 = scalar_select %p194, %s193, 1
          %s196 = smul.addr %s195, 8
          %s197 = scalar_lea.vmem %s0, %s196
          %s198 = smul.u32 2, %s21
        $region16: #{tpu_custom_call.1} parent=11 // pred_fallthru
          _
        // Predicated region
        $region17: #{tpu_custom_call.1} parent=11 // pred_check
          %p199 = pneg %p149
        $region18: #{tpu_custom_call.1} parent=11 // pred_check_branch
          %201 = sbr.rel (%p199) target = $region20
        $region19: #{tpu_custom_call.1} parent=11 // pred_region
          _
        $region20: #{tpu_custom_call.1} parent=11 // pred_fallthru
          _
      $region12: #{tpu_custom_call.1} parent=5 // pred_fallthru
        _
      %p202 = scmp.lt.s32.totalorder %s12, 2
      // Predicated region
      $region21: #{tpu_custom_call.1} parent=5 // pred_check
        %p203 = pneg %p202
      $region22: #{tpu_custom_call.1} parent=5 // pred_check_branch
        %205 = sbr.rel (%p203) target = $region24
      $region23: #{tpu_custom_call.1} parent=5 // pred_region
        // Predicated region
        $region25: #{tpu_custom_call.1} parent=23 // pred_check
          %p206 = pneg %p70
        $region26: #{tpu_custom_call.1} parent=23 // pred_check_branch
          %208 = sbr.rel (%p206) target = $region28
        $region27: #{tpu_custom_call.1} parent=23 // pred_region
          %s209 = sand.u32 %s60, 1
          %s210 = sand.u32 %s60, 1
          %s211 = smul.addr %s210, 64
          %s212 = scalar_lea.vmem [#allocation3], %s211
          %s213 = smul.u32 2, %s20
          %s214 = smul.addr %s213, 8
          %s215 = scalar_lea.vmem %s1, %s214
          // Predicated region
          $region29: #{tpu_custom_call.1} parent=27 // pred_check
            _
          $region30: #{tpu_custom_call.1} parent=27 // pred_check_branch
            %217 = sbr.rel (0) target = $region32
          $region31: #{tpu_custom_call.1} parent=27 // pred_region
            // Predicated region
            $region33: #{tpu_custom_call.1} parent=31 // pred_check
              _
            $region34: #{tpu_custom_call.1} parent=31 // pred_check_branch
              %219 = sbr.rel (0) target = $region36
            $region35: #{tpu_custom_call.1} parent=31 // pred_region
              loop: start=0, step=1, limit=1
              $region37: #{tpu_custom_call.1} parent=35 // loop_pre_header
                _
              $region38: #{tpu_custom_call.1} parent=35 // loop_header
                %s221 = sphi 0, %s225
                %p222 = scmp.ge.s32.totalorder %s221, 1
                %s226 = sphi %s215, %s215
                %s227 = sphi %s212, %s212
              $region39: #{tpu_custom_call.1} parent=35 // loop_header_branch
                %224 = sbr.rel (%p222) target = $region43
              $region40: #{tpu_custom_call.1} parent=35 // loop_body
                %v228 = vld [vmem:[%s226] sm:$0xff]
                %229 = vst [vmem:[%s227] sm:$0xff] %v228
                %v230 = vld [vmem:[%s226 + $0x8] sm:$0xff]
                %231 = vst [vmem:[%s227 + $0x8] sm:$0xff] %v230
                %v232 = vld [vmem:[%s226 + $0x20] sm:$0xff]
                %233 = vst [vmem:[%s227 + $0x10] sm:$0xff] %v232
                %v234 = vld [vmem:[%s226 + $0x28] sm:$0xff]
                %235 = vst [vmem:[%s227 + $0x18] sm:$0xff] %v234
                %v236 = vld [vmem:[%s226 + $0x40] sm:$0xff]
                %237 = vst [vmem:[%s227 + $0x20] sm:$0xff] %v236
                %v238 = vld [vmem:[%s226 + $0x48] sm:$0xff]
                %239 = vst [vmem:[%s227 + $0x28] sm:$0xff] %v238
                %v240 = vld [vmem:[%s226 + $0x60] sm:$0xff]
                %241 = vst [vmem:[%s227 + $0x30] sm:$0xff] %v240
                %v242 = vld [vmem:[%s226 + $0x68] sm:$0xff]
                %243 = vst [vmem:[%s227 + $0x38] sm:$0xff] %v242
              $region41: #{tpu_custom_call.1} parent=35 // loop_footer
                %s225 = sadd.s32 1, %s221
              $region42: #{tpu_custom_call.1} parent=35 // loop_footer_branch
                %220 = sbr.rel target = $region38
              $region43: #{tpu_custom_call.1} parent=35 // loop_exit
                _
            $region36: #{tpu_custom_call.1} parent=31 // pred_fallthru
              _
            // Predicated region
            $region44: #{tpu_custom_call.1} parent=31 // pred_check
              _
            $region45: #{tpu_custom_call.1} parent=31 // pred_check_branch
              %245 = sbr.rel target = $region47
            $region46: #{tpu_custom_call.1} parent=31 // pred_region
              _
            $region47: #{tpu_custom_call.1} parent=31 // pred_fallthru
              _
          $region32: #{tpu_custom_call.1} parent=27 // pred_fallthru
            _
          %246 = vnop
        $region28: #{tpu_custom_call.1} parent=23 // pred_fallthru
          _
        // Predicated region
        $region48: #{tpu_custom_call.1} parent=23 // pred_check
          %p247 = pneg %p96
        $region49: #{tpu_custom_call.1} parent=23 // pred_check_branch
          %249 = sbr.rel (%p247) target = $region51
        $region50: #{tpu_custom_call.1} parent=23 // pred_region
          %s250 = smul.u32 2, %s20
          %p251 = scmp.lt.s32.totalorder %s250, 3
          %s252 = scalar_select %p251, %s250, 3
          %s253 = scalar_lea.vmem %s2, %s252
          %s254 = smul.u32 2, %s20
        $region51: #{tpu_custom_call.1} parent=23 // pred_fallthru
          _
        // Predicated region
        $region52: #{tpu_custom_call.1} parent=23 // pred_check
          %p255 = pneg %p122
        $region53: #{tpu_custom_call.1} parent=23 // pred_check_branch
          %257 = sbr.rel (%p255) target = $region55
        $region54: #{tpu_custom_call.1} parent=23 // pred_region
          %s258 = smul.u32 16, %s20
          %p259 = scmp.lt.s32.totalorder %s258, 31
          %s260 = scalar_select %p259, %s258, 31
          %s261 = smul.addr %s260, 8
          %s262 = scalar_lea.vmem %s3, %s261
          %s263 = smul.u32 16, %s20
        $region55: #{tpu_custom_call.1} parent=23 // pred_fallthru
          _
      $region24: #{tpu_custom_call.1} parent=5 // pred_fallthru
        _
      %p264 = scmp.le.s32.totalorder 1, %s12
      %p265 = scmp.lt.s32.totalorder %s12, 3
      %p266 = pnand %p264, %p265
      %p267 = pneg %p266
      // Predicated region
      $region56: #{tpu_custom_call.1} parent=5 // pred_check
        _
      $region57: #{tpu_custom_call.1} parent=5 // pred_check_branch
        %269 = sbr.rel (%p266) target = $region59
      $region58: #{tpu_custom_call.1} parent=5 // pred_region
        %s270 = ssub.s32 %s12, 1
        %s271 = sand.u32 %s63, 1
        %s272 = sand.u32 %s63, 1
        %s273 = smul.addr %s272, 64
        %s274 = scalar_lea.vmem [#allocation3], %s273
        // Predicated region
        $region60: #{tpu_custom_call.1} parent=58 // pred_check
          %p275 = pneg %p76
        $region61: #{tpu_custom_call.1} parent=58 // pred_check_branch
          %277 = sbr.rel (%p275) target = $region63
        $region62: #{tpu_custom_call.1} parent=58 // pred_region
          _
        $region63: #{tpu_custom_call.1} parent=58 // pred_fallthru
          _
        %s278 = smul.u32 2, %s21
        %p279 = scmp.lt.s32.totalorder %s278, 1
        %s280 = scalar_select %p279, %s278, 1
        %s281 = smul.addr %s280, 8
        %s282 = scalar_lea.vmem %s0, %s281
        %p283 = pneg %p50
        %p284 = pneg %p47
        %s285 = sand.u32 %s63, 1
        %s286 = sand.u32 %s63, 1
        %s287 = smul.addr %s286, 64
        %s288 = scalar_lea.vmem [#allocation3], %s287
        %p289 = pneg %p76
        %p290 = pneg %p73
        %s291 = smul.u32 2, %s22
        %p292 = scmp.lt.s32.totalorder %s291, 3
        %s293 = scalar_select %p292, %s291, 3
        %s294 = scalar_lea.vmem %s2, %s293
        %p295 = pneg %p102
        %p296 = pneg %p99
        %s297 = smul.u32 16, %s22
        %p298 = scmp.lt.s32.totalorder %s297, 31
        %s299 = scalar_select %p298, %s297, 31
        %s300 = smul.addr %s299, 8
        %s301 = scalar_lea.vmem %s3, %s300
        %p302 = pneg %p128
        %p303 = pneg %p125
        %p304 = pneg %p149
        %p305 = pneg %p146
        %p306 = pneg %p175
        %p307 = pneg %p172
        %s308 = smul.u32 2, %s21
        %p309 = scmp.lt.s32.totalorder %s308, 1
        %s310 = scalar_select %p309, %s308, 1
        %s311 = smul.addr %s310, 8
        %s312 = scalar_lea.vmem %s0, %s311
        %s313 = smul.u32 2, %s21
        %s314 = smul.u32 2, %s22
        %s315 = smul.u32 2, %s22
        %p316 = scmp.lt.s32.totalorder %s315, 3
        %s317 = scalar_select %p316, %s315, 3
        %s318 = scalar_lea.vmem %s2, %s317
        %s319 = smul.u32 2, %s22
        %s320 = smul.u32 16, %s22
        %p321 = scmp.lt.s32.totalorder %s320, 31
        %s322 = scalar_select %p321, %s320, 31
        %s323 = smul.addr %s322, 8
        %s324 = scalar_lea.vmem %s3, %s323
        %s325 = smul.u32 16, %s22
        %s326 = smul.u32 2, %s21
        %p327 = scmp.eq.s32.totalorder %s22, 0
        // Predicated region
        $region64: #{tpu_custom_call.1} parent=58 // pred_check
          %p328 = pneg %p327
        $region65: #{tpu_custom_call.1} parent=58 // pred_check_branch
          %330 = sbr.rel (%p328) target = $region67
        $region66: #{tpu_custom_call.1} parent=58 // pred_region
          %v331 = vld [vmem:[%s4] sm:$0x1]
          %v333 = vperm.slane %v331, 0
          %vm335 = vcmask 261120
          %336 = vst.msk [vmem:[#allocation2] sm:$0xff] %vm335, %v333
          %337 = vst.msk [vmem:[#allocation2 + $0x8] sm:$0xff] %vm335, %v333
        $region67: #{tpu_custom_call.1} parent=58 // pred_fallthru
          _
        %v338 = vld [vmem:[%s312] sm:$0xff]
        %v339 = vld [vmem:[%s312 + $0x8] sm:$0xff]
        %v340 = vld [vmem:[%s274] sm:$0xff]
        %v341 = vld [vmem:[%s274 + $0x8] sm:$0xff]
        %v342 = vld [vmem:[%s274 + $0x10] sm:$0xff]
        %v343 = vld [vmem:[%s274 + $0x18] sm:$0xff]
        %v344 = vld [vmem:[%s274 + $0x20] sm:$0xff]
        %v345 = vld [vmem:[%s274 + $0x28] sm:$0xff]
        %v346 = vld [vmem:[%s274 + $0x30] sm:$0xff]
        %v347 = vld [vmem:[%s274 + $0x38] sm:$0xff]
        %v348 = vld [vmem:[%s318] sm:$0x3]
        %v350 = vperm.slane %v348, 0
        %v351 = vperm.slane %v348, 1
        %vm354 = vcmask 261120
        %v356 = vsel %vm354, %v338, 0
        %v359 = vsel %vm354, %v339, 0
        %361 = vmatpush.msra.mxu0 0.0
        %362 = vmatpush.msra.mxu0 0.0
        %363 = vmatpush.msra.mxu0 0.0
        %364 = vmatpush.msra.mxu0 0.0
        %365 = vmatpush.msra.mxu0 0.0
        %366 = vmatpush.msra.mxu0 0.0
        %367 = vmatpush.msra.mxu0 0.0
        %368 = vmatpush.msra.mxu0 0.0
        %369 = vmatpush.msra.mxu0 0.0
        %370 = vmatpush.msra.mxu0 0.0
        %371 = vmatpush.msra.mxu0 0.0
        %372 = vmatpush.msra.mxu0 0.0
        %373 = vmatpush.msra.mxu0 %v346
        %374 = vmatpush.msra.mxu0 %v344
        %375 = vmatpush.msra.mxu0 %v342
        %376 = vmatpush.msra.mxu0 %v340
        %377 = vmatmul.f32.gmra.mxu0 %v356
        %v378 = vpop.f32.mrf.mxu0
        %v379 = vadd.f32 %v350, %v378
        %380 = vmatmul.f32.gmra.mxu0 %v359
        %v381 = vpop.f32.mrf.mxu0
        %v382 = vadd.f32 %v350, %v381
        %383 = vdwg.mxu0
        %384 = vmatpush.msra.mxu0 0.0
        %385 = vmatpush.msra.mxu0 0.0
        %386 = vmatpush.msra.mxu0 0.0
        %387 = vmatpush.msra.mxu0 0.0
        %388 = vmatpush.msra.mxu0 0.0
        %389 = vmatpush.msra.mxu0 0.0
        %390 = vmatpush.msra.mxu0 0.0
        %391 = vmatpush.msra.mxu0 0.0
        %392 = vmatpush.msra.mxu0 0.0
        %393 = vmatpush.msra.mxu0 0.0
        %394 = vmatpush.msra.mxu0 0.0
        %395 = vmatpush.msra.mxu0 0.0
        %396 = vmatpush.msra.mxu0 %v347
        %397 = vmatpush.msra.mxu0 %v345
        %398 = vmatpush.msra.mxu0 %v343
        %399 = vmatpush.msra.mxu0 %v341
        %400 = vmatmul.f32.gmra.mxu0 %v356
        %v401 = vpop.f32.mrf.mxu0
        %v402 = vadd.f32 %v351, %v401
        %403 = vmatmul.f32.gmra.mxu0 %v359
        %v404 = vpop.f32.mrf.mxu0
        %v405 = vadd.f32 %v351, %v404
        %406 = vdwg.mxu0
        %v407 = vmul.f32 %v402, 0.5
        %v408 = vmul.f32 %v405, 0.5
        %v409 = vmul.f32 %v402, 0.70710677
        %v410 = vmul.f32 %v405, 0.70710677
        %v411 = vmul.f32 %v409, %v409
        %v412 = vmin.f32 16.0, %v411
        %v413 = vmul.f32 %v412, 2.1237322e-06
        %v414 = vadd.f32 %v413, 0.00028619796
        %v415 = vmul.f32 %v412, %v414
        %v416 = vadd.f32 %v415, 0.0036580483
        %v417 = vmul.f32 %v412, %v416
        %v418 = vadd.f32 %v417, 0.05243302
        %v419 = vmul.f32 %v412, %v418
        %v420 = vadd.f32 %v419, 0.18741608
        %v421 = vmul.f32 %v412, %v420
        %v422 = vadd.f32 %v421, 1.1283791
        %v423 = vmul.f32 %v409, %v422
        %v424 = vmul.f32 %v412, 3.8918573e-05
        %v425 = vadd.f32 %v424, 0.001143296
        %v426 = vmul.f32 %v412, %v425
        %v427 = vadd.f32 %v426, 0.014752088
        %v428 = vmul.f32 %v412, %v427
        %v429 = vadd.f32 %v428, 0.112945676
        %v430 = vmul.f32 %v412, %v429
        %v431 = vadd.f32 %v430, 0.4994258
        %v432 = vmul.f32 %v412, %v431
        %v433 = vadd.f32 %v432, 1.0
        %v434 = vrcp.pop %v433
        %v435 = vmul.f32 %v433, %v434
        %v436 = vsub.f32 1.0, %v435
        %v437 = vmul.f32 %v434, %v436
        %v438 = vadd.f32 %v434, %v437
        %vm439 = vweird.f32 %v433
        %vm440 = vweird.f32 %v434
        %vm441 = vmor %vm439, %vm440
        %v442 = vsel %vm441, %v434, %v438
        %v443 = vand.u32 2147483647, %v433
        %vm444 = vcmp.eq.f32.partialorder %v443, 8.507059e+37
        %v445 = vand.u32 %v433, 2147483648
        %v446 = vor.u32 1.1754944e-38, %v445
        %v447 = vsel %vm444, %v446, %v442
        %v448 = vmul.f32 %v423, %v447
        %v449 = vmin.f32 %v448, 1.0
        %v450 = vmax.f32 %v449, -1.0
        %v451 = vmul.f32 %v410, %v410
        %v452 = vmin.f32 16.0, %v451
        %v453 = vmul.f32 %v452, 2.1237322e-06
        %v454 = vadd.f32 %v453, 0.00028619796
        %v455 = vmul.f32 %v452, %v454
        %v456 = vadd.f32 %v455, 0.0036580483
        %v457 = vmul.f32 %v452, %v456
        %v458 = vadd.f32 %v457, 0.05243302
        %v459 = vmul.f32 %v452, %v458
        %v460 = vadd.f32 %v459, 0.18741608
        %v461 = vmul.f32 %v452, %v460
        %v462 = vadd.f32 %v461, 1.1283791
        %v463 = vmul.f32 %v410, %v462
        %v464 = vmul.f32 %v452, 3.8918573e-05
        %v465 = vadd.f32 %v464, 0.001143296
        %v466 = vmul.f32 %v452, %v465
        %v467 = vadd.f32 %v466, 0.014752088
        %v468 = vmul.f32 %v452, %v467
        %v469 = vadd.f32 %v468, 0.112945676
        %v470 = vmul.f32 %v452, %v469
        %v471 = vadd.f32 %v470, 0.4994258
        %v472 = vmul.f32 %v452, %v471
        %v473 = vadd.f32 %v472, 1.0
        %v474 = vrcp.pop %v473
        %v475 = vmul.f32 %v473, %v474
        %v476 = vsub.f32 1.0, %v475
        %v477 = vmul.f32 %v474, %v476
        %v478 = vadd.f32 %v474, %v477
        %vm479 = vweird.f32 %v473
        %vm480 = vweird.f32 %v474
        %vm481 = vmor %vm479, %vm480
        %v482 = vsel %vm481, %v474, %v478
        %v483 = vand.u32 2147483647, %v473
        %vm484 = vcmp.eq.f32.partialorder %v483, 8.507059e+37
        %v485 = vand.u32 %v473, 2147483648
        %v486 = vor.u32 1.1754944e-38, %v485
        %v487 = vsel %vm484, %v486, %v482
        %v488 = vmul.f32 %v463, %v487
        %v489 = vmin.f32 %v488, 1.0
        %v490 = vmax.f32 %v489, -1.0
        %v491 = vadd.f32 %v450, 1.0
        %v492 = vadd.f32 %v490, 1.0
        %v493 = vmul.f32 %v407, %v491
        %v494 = vmul.f32 %v408, %v492
        %v495 = vmul.f32 %v379, %v493
        %v496 = vmul.f32 %v382, %v494
        %v497 = vld [vmem:[#allocation2] sm:$0xff]
        %v498 = vld [vmem:[#allocation2 + $0x8] sm:$0xff]
        %v499 = vld [vmem:[%s324] sm:$0xff]
        %v500 = vld [vmem:[%s324 + $0x8] sm:$0xff]
        %v501 = vld [vmem:[%s324 + $0x10] sm:$0xff]
        %v502 = vld [vmem:[%s324 + $0x18] sm:$0xff]
        %v503 = vld [vmem:[%s324 + $0x20] sm:$0xff]
        %v504 = vld [vmem:[%s324 + $0x28] sm:$0xff]
        %v505 = vld [vmem:[%s324 + $0x30] sm:$0xff]
        %v506 = vld [vmem:[%s324 + $0x38] sm:$0xff]
        %v507 = vld [vmem:[%s324 + $0x40] sm:$0xff]
        %v508 = vld [vmem:[%s324 + $0x48] sm:$0xff]
        %v509 = vld [vmem:[%s324 + $0x50] sm:$0xff]
        %v510 = vld [vmem:[%s324 + $0x58] sm:$0xff]
        %v511 = vld [vmem:[%s324 + $0x60] sm:$0xff]
        %v512 = vld [vmem:[%s324 + $0x68] sm:$0xff]
        %v513 = vld [vmem:[%s324 + $0x70] sm:$0xff]
        %v514 = vld [vmem:[%s324 + $0x78] sm:$0xff]
        %515 = vmatpush.msra.mxu0 %v514
        %516 = vmatpush.msra.mxu0 %v513
        %517 = vmatpush.msra.mxu0 %v512
        %518 = vmatpush.msra.mxu0 %v511
        %519 = vmatpush.msra.mxu0 %v510
        %520 = vmatpush.msra.mxu0 %v509
        %521 = vmatpush.msra.mxu0 %v508
        %522 = vmatpush.msra.mxu0 %v507
        %523 = vmatpush.msra.mxu0 %v506
        %524 = vmatpush.msra.mxu0 %v505
        %525 = vmatpush.msra.mxu0 %v504
        %526 = vmatpush.msra.mxu0 %v503
        %527 = vmatpush.msra.mxu0 %v502
        %528 = vmatpush.msra.mxu0 %v501
        %529 = vmatpush.msra.mxu0 %v500
        %530 = vmatpush.msra.mxu0 %v499
        %531 = vmatmul.f32.gmra.mxu0 %v495
        %v532 = vpop.f32.mrf.mxu0
        %v533 = vadd.f32 0.0, %v532
        %534 = vmatmul.f32.gmra.mxu0 %v496
        %v535 = vpop.f32.mrf.mxu0
        %v536 = vadd.f32 0.0, %v535
        %537 = vdwg.mxu0
        %v538 = vadd.f32 %v497, %v533
        %v539 = vadd.f32 %v498, %v536
        %540 = vst.msk [vmem:[#allocation2] sm:$0xff] %vm354, %v538
        %541 = vst.msk [vmem:[#allocation2 + $0x8] sm:$0xff] %vm354, %v539
        %p542 = scmp.eq.s32.totalorder %s22, 1
        // Predicated region
        $region68: #{tpu_custom_call.1} parent=58 // pred_check
          %p543 = pneg %p542
        $region69: #{tpu_custom_call.1} parent=58 // pred_check_branch
          %545 = sbr.rel (%p543) target = $region71
        $region70: #{tpu_custom_call.1} parent=58 // pred_region
          %v546 = vld [vmem:[#allocation2] sm:$0xff]
          %v547 = vld [vmem:[#allocation2 + $0x8] sm:$0xff]
          %548 = vst.msk [vmem:[#allocation4] sm:$0xff] %vm354, %v546
          %549 = vst.msk [vmem:[#allocation4 + $0x8] sm:$0xff] %vm354, %v547
        $region71: #{tpu_custom_call.1} parent=58 // pred_fallthru
          _
        // Predicated region
        $region72: #{tpu_custom_call.1} parent=58 // pred_check
          %p550 = pneg %p172
        $region73: #{tpu_custom_call.1} parent=58 // pred_check_branch
          %552 = sbr.rel (%p550) target = $region75
        $region74: #{tpu_custom_call.1} parent=58 // pred_region
          %s553 = smul.u32 2, %s21
          %555 = vsyncadd [#allocation5], 0
          %s556 = smul.addr %s553, 8
          %s557 = scalar_lea.hbm %s5, %s556
          %s558 = sshll.u32 [#allocation4], 4
          %s559 = int_to_ptr.vmem [resolvable:$true] %s558
          %s560 = sshll.u32 %s557, 4
          %s561 = int_to_ptr.hbm [resolvable:$true] %s560
          %566 = dma.vmem_to_hbm [thread:$0]  %s559, 256, %s561, [#allocation5], 128, 128, 8
        $region75: #{tpu_custom_call.1} parent=58 // pred_fallthru
          _
        // Predicated region
        $region76: #{tpu_custom_call.1} parent=58 // pred_check
          %p567 = pneg %p172
        $region77: #{tpu_custom_call.1} parent=58 // pred_check_branch
          %569 = sbr.rel (%p567) target = $region79
        $region78: #{tpu_custom_call.1} parent=58 // pred_region
          %571 = dma.done [#allocation5], 256
        $region79: #{tpu_custom_call.1} parent=58 // pred_fallthru
          _
      $region59: #{tpu_custom_call.1} parent=5 // pred_fallthru
        _
      %p572 = scmp.le.s32.totalorder 2, %s12
      // Predicated region
      $region80: #{tpu_custom_call.1} parent=5 // pred_check
        %p573 = pneg %p572
      $region81: #{tpu_custom_call.1} parent=5 // pred_check_branch
        %575 = sbr.rel (%p573) target = $region83
      $region82: #{tpu_custom_call.1} parent=5 // pred_region
        %s576 = ssub.s32 %s12, 2
      $region83: #{tpu_custom_call.1} parent=5 // pred_fallthru
        _
    $region6: #{tpu_custom_call.1} parent=1 // loop_footer
      %s16 = sadd.s32 1, %s12
    $region7: #{tpu_custom_call.1} parent=1 // loop_footer_branch
      %11 = sbr.rel target = $region3
    $region8: #{tpu_custom_call.1} parent=1 // loop_exit
      _
    %577 = vsyncpa [#allocation5], 1
    %s578 = scalar_lea.sflag [#allocation5], 1
    %579 = vsyncpa %s578, 1

</llo_original>
